<compile_context>
chip_gen: v7x
topology: tpu7x:2x2x1
jax: 0.10.0
libtpu: 0.0.40
codegen_flags: <defaults>
</compile_context>

<pallas_src>
import functools
import math

import jax
import jax.numpy as jnp
from jax.experimental import pallas as pl
from jax.experimental.pallas import tpu as pltpu

_FOCAL_ALPHA = 0.25          # torchvision sigmoid_focal_loss defaults
_TH_MAX = 128                # max sublane rows per block
_BLOCK_BYTES = 1 << 20       # ~1 MiB target per input block (per buffer)


def _pick_th(H, C, W):
    """H-tile (sublane) size for one level's block: multiple of 8 or full H."""
    if H <= 8:
        return H
    th = _BLOCK_BYTES // max(1, C * W * 4)
    th = min(th, H, _TH_MAX)
    th = max(8, (th // 8) * 8)
    if th >= H:
        return H
    return th


# --------------------------------------------------------------------------- #
# In-kernel math helpers (Mosaic-safe: exp/log/abs/min/max/where/reciprocal)
# --------------------------------------------------------------------------- #
def _atan(x):
    # Polynomial arctan (avoids relying on lax.atan lowering); |err| ~1e-5.
    c1, c3, c5, c7, c9 = (0.9998660, -0.3302995, 0.1801410, -0.0851330, 0.0208351)
    ax = jnp.abs(x)
    big = ax > 1.0
    t = jnp.where(big, pl.reciprocal(jnp.maximum(ax, 1e-30), approx=True), ax)
    t2 = t * t
    r = t * (c1 + t2 * (c3 + t2 * (c5 + t2 * (c7 + t2 * c9))))
    r = jnp.where(big, (math.pi / 2.0) - r, r)
    return jnp.where(x < 0.0, -r, r)


def _bce_with_logits(x, t):
    # numerically stable elementwise binary cross entropy with logits
    return jnp.maximum(x, 0.0) - x * t + jnp.log(1.0 + jnp.exp(-jnp.abs(x)))


def _ciou_loss(px1, py1, px2, py2, tx1, ty1, tx2, ty2, eps=1e-7):
    # TODO(synk): box_ciou source not provided; assumed elementwise CIoU loss
    # (1 - IoU + centre-distance / enclosing-diag + aspect-ratio term).
    iw = jnp.maximum(jnp.minimum(px2, tx2) - jnp.maximum(px1, tx1), 0.0)
    ih = jnp.maximum(jnp.minimum(py2, ty2) - jnp.maximum(py1, ty1), 0.0)
    inter = iw * ih
    area_p = (px2 - px1) * (py2 - py1)
    area_t = (tx2 - tx1) * (ty2 - ty1)
    union = area_p + area_t - inter
    iou = inter * pl.reciprocal(union + eps, approx=True)

    cw = jnp.maximum(px2, tx2) - jnp.minimum(px1, tx1)
    ch = jnp.maximum(py2, ty2) - jnp.minimum(py1, ty1)
    c2 = cw * cw + ch * ch + eps
    rho2 = ((px1 + px2 - tx1 - tx2) ** 2 + (py1 + py2 - ty1 - ty2) ** 2) * 0.25

    wp, hp = px2 - px1, py2 - py1
    wt, ht = tx2 - tx1, ty2 - ty1
    dv = (_atan(wt * pl.reciprocal(ht + eps, approx=True))
          - _atan(wp * pl.reciprocal(hp + eps, approx=True)))
    v = (4.0 / (math.pi ** 2)) * dv * dv
    # clamp keeps the denominator strictly positive even with approx reciprocal
    alpha = v * pl.reciprocal(jnp.maximum(1.0 - iou + v, 0.0) + eps, approx=True)
    return (1.0 - iou) + rho2 * pl.reciprocal(c2, approx=True) + alpha * v


# --------------------------------------------------------------------------- #
# Pallas kernel: one FCOS level, block = (C, TH, W) of the raw joint map
# --------------------------------------------------------------------------- #
def _level_loss_kernel(x_ref, y_ref, out_ref,
                       reg_acc, ctr_acc, cls_acc, ctrt_acc, pos_acc,
                       *, stride, height):
    c_tot, th, w = x_ref.shape
    num_classes = c_tot - 5
    h = pl.program_id(1)
    nh = pl.num_programs(1)

    @pl.when(h == 0)
    def _init():
        reg_acc[...] = jnp.zeros_like(reg_acc)
        ctr_acc[...] = jnp.zeros_like(ctr_acc)
        cls_acc[...] = jnp.zeros_like(cls_acc)
        ctrt_acc[...] = jnp.zeros_like(ctrt_acc)
        pos_acc[...] = jnp.zeros_like(pos_acc)

    # ---- row-validity mask for the (possibly partial) last H tile ---------
    row = jax.lax.broadcasted_iota(jnp.int32, (th, w), 0) + h * th
    valid = row < height                                     # (th, w) bool

    f32 = jnp.float32
    s = stride

    # ---- positive mask: any foreground-class target nonzero ---------------
    fg = y_ref[6:5 + num_classes].astype(f32)                # (K-1, th, w)
    mx = jnp.max(fg, axis=0)                                 # (th, w)
    pos = jnp.logical_and(mx != 0.0, valid)                  # (th, w) bool

    # ---- regression: elementwise CIoU on decoded boxes ---------------------
    # TODO(synk): Unmapper._unmap_reg_level / split_joint_tensor sources not
    # provided; assumed channel order [reg(4: l,t,r,b), centerness(1), cls(K)]
    # with ltrb distances in stride units decoded around each cell centre.
    # The common centre offset cancels inside CIoU, so only the stride scale
    # is applied here (mathematically identical, no centre arrays needed).
    lp, tp, rp, bp = (x_ref[0].astype(f32), x_ref[1].astype(f32),
                      x_ref[2].astype(f32), x_ref[3].astype(f32))
    lt, tt, rt, bt = (y_ref[0].astype(f32), y_ref[1].astype(f32),
                      y_ref[2].astype(f32), y_ref[3].astype(f32))
    ciou = _ciou_loss(-lp * s, -tp * s, rp * s, bp * s,
                      -lt * s, -tt * s, rt * s, bt * s)      # (th, w)

    # ---- centerness: BCE with logits ---------------------------------------
    ctr_p = x_ref[4].astype(f32)
    ctr_t = y_ref[4].astype(f32)
    bce = _bce_with_logits(ctr_p, ctr_t)                     # (th, w)

    # ---- classification: sigmoid focal loss (alpha=0.25, gamma=2) ----------
    cls_p = x_ref[5:5 + num_classes].astype(f32)             # (K, th, w)
    cls_t = y_ref[5:5 + num_classes].astype(f32)
    ex = jnp.exp(-jnp.abs(cls_p))                            # shared exp
    inv1pe = pl.reciprocal(1.0 + ex, approx=True)
    p = jnp.where(cls_p >= 0.0, inv1pe, ex * inv1pe)         # sigmoid(cls_p)
    ce = jnp.maximum(cls_p, 0.0) - cls_p * cls_t + jnp.log(1.0 + ex)
    p_t = p * cls_t + (1.0 - p) * (1.0 - cls_t)
    a_t = _FOCAL_ALPHA * cls_t + (1.0 - _FOCAL_ALPHA) * (1.0 - cls_t)
    q = 1.0 - p_t
    focal = jnp.sum(a_t * ce * q * q, axis=0)                # (th, w)

    # ---- masked sublane/lane-wise accumulation (selects, NaN-safe) ---------
    reg_acc[...] += jnp.where(pos, ciou, 0.0)
    ctr_acc[...] += jnp.where(pos, bce, 0.0)
    cls_acc[...] += jnp.where(valid, focal, 0.0)
    ctrt_acc[...] += jnp.where(valid, ctr_t, 0.0)
    pos_acc[...] += jnp.where(pos, 1.0, 0.0)

    # ---- single cross-lane reduction + store, once per batch sample --------
    @pl.when(h == nh - 1)
    def _finalize():
        rid = jax.lax.broadcasted_iota(jnp.int32, (8, 128), 0)
        res = (jnp.where(rid == 0, jnp.sum(reg_acc[...]), 0.0)
               + jnp.where(rid == 1, jnp.sum(ctr_acc[...]), 0.0)
               + jnp.where(rid == 2, jnp.sum(cls_acc[...]), 0.0)
               + jnp.where(rid == 3, jnp.sum(ctrt_acc[...]), 0.0)
               + jnp.where(rid == 4, jnp.sum(pos_acc[...]), 0.0))
        out_ref[...] = res                                   # (8, 128)


# --------------------------------------------------------------------------- #
# Python wrapper reproducing Loss.forward semantics
# --------------------------------------------------------------------------- #
class FCOSLoss:
    """JAX/Pallas port of detector/fcos/loss.py::Loss (forward pass only)."""

    def __init__(self, strides, image_size, num_classes):
        self.strides = strides
        self.image_size = image_size
        self.num_classes = num_classes

    def _level_partial(self, level, xm, ym):
        B, C, H, W = xm.shape
        th = _pick_th(H, C, W)
        nh = pl.cdiv(H, th)
        kernel = functools.partial(_level_loss_kernel,
                                   stride=float(self.strides[level]), height=H)
        out = pl.pallas_call(
            kernel,
            out_shape=jax.ShapeDtypeStruct((B, 8, 128), jnp.float32),
            grid_spec=pltpu.PrefetchScalarGridSpec(
                num_scalar_prefetch=0,
                grid=(B, nh),
                in_specs=[
                    pl.BlockSpec((None, C, th, W), lambda b, h: (b, 0, h, 0)),
                    pl.BlockSpec((None, C, th, W), lambda b, h: (b, 0, h, 0)),
                ],
                out_specs=pl.BlockSpec((None, 8, 128), lambda b, h: (b, 0, 0)),
                scratch_shapes=[pltpu.VMEM((th, W), jnp.float32)
                                for _ in range(5)],
            ),
            compiler_params=pltpu.CompilerParams(
                dimension_semantics=("parallel", "arbitrary")),
        )(xm, ym)
        # rows: 0=reg_sum 1=ctr_sum 2=cls_sum 3=centerness_target_sum 4=n_pos
        return out[:, :5, 0].sum(axis=0)                     # (5,)

    def __call__(self, x, y):
        K = self.num_classes
        partial_sums = []
        for l, (xm, ym) in enumerate(zip(x, y)):
            xm = jnp.asarray(xm)
            ym = jnp.asarray(ym)
            assert xm.shape == ym.shape and xm.shape[1] == 5 + K
            partial_sums.append(self._level_partial(l, xm, ym))
        sums = jnp.sum(jnp.stack(partial_sums, axis=0), axis=0)
        reg_sum, ctr_sum, cls_sum = sums[0], sums[1], sums[2]
        ctrt_sum, n_pos = sums[3], sums[4]

        # reference Loss.forward combination
        has_pos = n_pos > 0.0
        safe_n = jnp.where(has_pos, n_pos, 1.0)
        safe_c = jnp.where(ctrt_sum != 0.0, ctrt_sum, 1.0)

        reg_loss = jnp.where(
            has_pos,
            jnp.where(ctrt_sum != 0.0, reg_sum / safe_c, reg_sum),
            0.0)
        centerness_loss = jnp.where(has_pos, ctr_sum / safe_n, 0.0)
        cls_loss = jnp.where(has_pos, cls_sum / safe_n, cls_sum)
        total = reg_loss + centerness_loss + cls_loss
        return {"total": total, "reg": reg_loss,
                "centerness": centerness_loss, "cls": cls_loss}


# --------------------------------------------------------------------------- #
# Demo
# --------------------------------------------------------------------------- #
if __name__ == "__main__":
    strides = (8, 16)
    image_size = (32, 32)
    num_classes = 4
    B = 2
    C_total = 4 + 1 + num_classes  # joint map: reg(4)+centerness(1)+cls(K)

    key = jax.random.PRNGKey(0)
    x_levels, y_levels = [], []
    for s in strides:
        H, W = image_size[0] // s, image_size[1] // s
        key, kx, kr, kc, kl = jax.random.split(key, 5)

        # prediction map (NCHW, like the PyTorch module's input)
        xm = jax.random.normal(kx, (B, C_total, H, W), jnp.float32)
        xm = xm.at[:, 0:4].set(jnp.abs(xm[:, 0:4]))  # sane predicted distances

        # target map (NCHW): positive reg distances, centerness in [0,1],
        # one-hot classes with class 0 = background
        reg_t = jax.random.uniform(kr, (B, 4, H, W), minval=0.2, maxval=3.0)
        ctr_t = jax.random.uniform(kc, (B, 1, H, W))
        labels = jax.random.randint(kl, (B, H, W), 0, num_classes)
        cls_t = jnp.transpose(
            jax.nn.one_hot(labels, num_classes, dtype=jnp.float32), (0, 3, 1, 2))
        ym = jnp.concatenate(
            [reg_t, ctr_t * (labels[:, None] > 0).astype(jnp.float32), cls_t],
            axis=1)

        x_levels.append(xm)
        y_levels.append(ym)

    loss = FCOSLoss(strides, image_size, num_classes)
    out = loss(x_levels, y_levels)
    out = jax.tree_util.tree_map(jax.block_until_ready, out)
    assert all(bool(jnp.isfinite(v)) for v in out.values())
    print("KERNEL_OK")
</pallas_src>

<mosaic_0001>
module attributes {stable_mosaic.version = 11 : i64} {
  func.func @_level_loss_kernel(%arg0: i32, %arg1: i32, %arg2: memref<1x9x4x4xf32, #tpu.memory_space<vmem>>, %arg3: memref<1x9x4x4xf32, #tpu.memory_space<vmem>>, %arg4: memref<1x8x128xf32, #tpu.memory_space<vmem>>, %arg5: memref<4x4xf32, #tpu.memory_space<vmem>>, %arg6: memref<4x4xf32, #tpu.memory_space<vmem>>, %arg7: memref<4x4xf32, #tpu.memory_space<vmem>>, %arg8: memref<4x4xf32, #tpu.memory_space<vmem>>, %arg9: memref<4x4xf32, #tpu.memory_space<vmem>>) attributes {dimension_semantics = [#tpu.dimension_semantics<parallel>, #tpu.dimension_semantics<arbitrary>], iteration_bounds = array<i64: 2, 1>, scalar_prefetch = 0 : i64, scratch_operands = 5 : i64, tpu.core_type = #tpu.core_type<tc>, window_params = [{transform_indices = @transform_0, window_bounds = array<i64: 1, 9, 4, 4>}, {transform_indices = @transform_1, window_bounds = array<i64: 1, 9, 4, 4>}, {transform_indices = @transform_2, window_bounds = array<i64: 1, 8, 128>}]} {
    %c0_i32 = arith.constant 0 : i32
    %0 = arith.cmpi eq, %arg1, %c0_i32 : i32
    %1 = arith.extui %0 : i1 to i32
    %c0_i32_0 = arith.constant 0 : i32
    %2 = arith.cmpi ne, %1, %c0_i32_0 : i32
    scf.if %2 {
      %cst_135 = arith.constant 0.000000e+00 : f32
      %280 = vector.broadcast %cst_135 : f32 to vector<4x4xf32>
      %c0_136 = arith.constant 0 : index
      %c0_137 = arith.constant 0 : index
      %281 = vector.load %arg5[%c0_136, %c0_137] : memref<4x4xf32, #tpu.memory_space<vmem>>, vector<4x4xf32>
      tpu.vector_store %arg5[%c0_136, %c0_137], %280 {strides = array<i32>} : memref<4x4xf32, #tpu.memory_space<vmem>>, vector<4x4xf32>,
      %cst_138 = arith.constant 0.000000e+00 : f32
      %282 = vector.broadcast %cst_138 : f32 to vector<4x4xf32>
      %c0_139 = arith.constant 0 : index
      %c0_140 = arith.constant 0 : index
      %283 = vector.load %arg6[%c0_139, %c0_140] : memref<4x4xf32, #tpu.memory_space<vmem>>, vector<4x4xf32>
      tpu.vector_store %arg6[%c0_139, %c0_140], %282 {strides = array<i32>} : memref<4x4xf32, #tpu.memory_space<vmem>>, vector<4x4xf32>,
      %cst_141 = arith.constant 0.000000e+00 : f32
      %284 = vector.broadcast %cst_141 : f32 to vector<4x4xf32>
      %c0_142 = arith.constant 0 : index
      %c0_143 = arith.constant 0 : index
      %285 = vector.load %arg7[%c0_142, %c0_143] : memref<4x4xf32, #tpu.memory_space<vmem>>, vector<4x4xf32>
      tpu.vector_store %arg7[%c0_142, %c0_143], %284 {strides = array<i32>} : memref<4x4xf32, #tpu.memory_space<vmem>>, vector<4x4xf32>,
      %cst_144 = arith.constant 0.000000e+00 : f32
      %286 = vector.broadcast %cst_144 : f32 to vector<4x4xf32>
      %c0_145 = arith.constant 0 : index
      %c0_146 = arith.constant 0 : index
      %287 = vector.load %arg8[%c0_145, %c0_146] : memref<4x4xf32, #tpu.memory_space<vmem>>, vector<4x4xf32>
      tpu.vector_store %arg8[%c0_145, %c0_146], %286 {strides = array<i32>} : memref<4x4xf32, #tpu.memory_space<vmem>>, vector<4x4xf32>,
      %cst_147 = arith.constant 0.000000e+00 : f32
      %288 = vector.broadcast %cst_147 : f32 to vector<4x4xf32>
      %c0_148 = arith.constant 0 : index
      %c0_149 = arith.constant 0 : index
      %289 = vector.load %arg9[%c0_148, %c0_149] : memref<4x4xf32, #tpu.memory_space<vmem>>, vector<4x4xf32>
      tpu.vector_store %arg9[%c0_148, %c0_149], %288 {strides = array<i32>} : memref<4x4xf32, #tpu.memory_space<vmem>>, vector<4x4xf32>,
    } else {
    }
    %3 = tpu.iota {dimensions = array<i32: 0>} : vector<4x4xi32>
    %c4_i32 = arith.constant 4 : i32
    %4 = arith.muli %arg1, %c4_i32 : i32
    %5 = vector.broadcast %4 : i32 to vector<4x4xi32>
    %6 = arith.addi %3, %5 : vector<4x4xi32>
    %c4_i32_1 = arith.constant 4 : i32
    %7 = vector.broadcast %c4_i32_1 : i32 to vector<4x4xi32>
    %8 = arith.cmpi slt, %6, %7 : vector<4x4xi32>
    %c0 = arith.constant 0 : index
    %c6 = arith.constant 6 : index
    %c0_2 = arith.constant 0 : index
    %c0_3 = arith.constant 0 : index
    %9 = vector.load %arg3[%c0, %c6, %c0_2, %c0_3] : memref<1x9x4x4xf32, #tpu.memory_space<vmem>>, vector<1x3x4x4xf32>
    %10 = vector.shape_cast %9 : vector<1x3x4x4xf32> to vector<3x4x4xf32>
    %cst = arith.constant dense<0xFF800000> : vector<4x4xf32>
    %11 = vector.multi_reduction <maximumf>, %10, %cst [0] : vector<3x4x4xf32> to vector<4x4xf32>
    %cst_4 = arith.constant 0.000000e+00 : f32
    %12 = vector.broadcast %cst_4 : f32 to vector<4x4xf32>
    %13 = arith.cmpf one, %11, %12 : vector<4x4xf32>
    %14 = arith.andi %13, %8 : vector<4x4xi1>
    %c0_5 = arith.constant 0 : index
    %c0_6 = arith.constant 0 : index
    %c0_7 = arith.constant 0 : index
    %c0_8 = arith.constant 0 : index
    %15 = vector.load %arg2[%c0_5, %c0_6, %c0_7, %c0_8] : memref<1x9x4x4xf32, #tpu.memory_space<vmem>>, vector<1x1x4x4xf32>
    %16 = vector.shape_cast %15 : vector<1x1x4x4xf32> to vector<4x4xf32>
    %c0_9 = arith.constant 0 : index
    %c1 = arith.constant 1 : index
    %c0_10 = arith.constant 0 : index
    %c0_11 = arith.constant 0 : index
    %17 = vector.load %arg2[%c0_9, %c1, %c0_10, %c0_11] : memref<1x9x4x4xf32, #tpu.memory_space<vmem>>, vector<1x1x4x4xf32>
    %18 = vector.shape_cast %17 : vector<1x1x4x4xf32> to vector<4x4xf32>
    %c0_12 = arith.constant 0 : index
    %c2 = arith.constant 2 : index
    %c0_13 = arith.constant 0 : index
    %c0_14 = arith.constant 0 : index
    %19 = vector.load %arg2[%c0_12, %c2, %c0_13, %c0_14] : memref<1x9x4x4xf32, #tpu.memory_space<vmem>>, vector<1x1x4x4xf32>
    %20 = vector.shape_cast %19 : vector<1x1x4x4xf32> to vector<4x4xf32>
    %c0_15 = arith.constant 0 : index
    %c3 = arith.constant 3 : index
    %c0_16 = arith.constant 0 : index
    %c0_17 = arith.constant 0 : index
    %21 = vector.load %arg2[%c0_15, %c3, %c0_16, %c0_17] : memref<1x9x4x4xf32, #tpu.memory_space<vmem>>, vector<1x1x4x4xf32>
    %22 = vector.shape_cast %21 : vector<1x1x4x4xf32> to vector<4x4xf32>
    %c0_18 = arith.constant 0 : index
    %c0_19 = arith.constant 0 : index
    %c0_20 = arith.constant 0 : index
    %c0_21 = arith.constant 0 : index
    %23 = vector.load %arg3[%c0_18, %c0_19, %c0_20, %c0_21] : memref<1x9x4x4xf32, #tpu.memory_space<vmem>>, vector<1x1x4x4xf32>
    %24 = vector.shape_cast %23 : vector<1x1x4x4xf32> to vector<4x4xf32>
    %c0_22 = arith.constant 0 : index
    %c1_23 = arith.constant 1 : index
    %c0_24 = arith.constant 0 : index
    %c0_25 = arith.constant 0 : index
    %25 = vector.load %arg3[%c0_22, %c1_23, %c0_24, %c0_25] : memref<1x9x4x4xf32, #tpu.memory_space<vmem>>, vector<1x1x4x4xf32>
    %26 = vector.shape_cast %25 : vector<1x1x4x4xf32> to vector<4x4xf32>
    %c0_26 = arith.constant 0 : index
    %c2_27 = arith.constant 2 : index
    %c0_28 = arith.constant 0 : index
    %c0_29 = arith.constant 0 : index
    %27 = vector.load %arg3[%c0_26, %c2_27, %c0_28, %c0_29] : memref<1x9x4x4xf32, #tpu.memory_space<vmem>>, vector<1x1x4x4xf32>
    %28 = vector.shape_cast %27 : vector<1x1x4x4xf32> to vector<4x4xf32>
    %c0_30 = arith.constant 0 : index
    %c3_31 = arith.constant 3 : index
    %c0_32 = arith.constant 0 : index
    %c0_33 = arith.constant 0 : index
    %29 = vector.load %arg3[%c0_30, %c3_31, %c0_32, %c0_33] : memref<1x9x4x4xf32, #tpu.memory_space<vmem>>, vector<1x1x4x4xf32>
    %30 = vector.shape_cast %29 : vector<1x1x4x4xf32> to vector<4x4xf32>
    %cst_34 = arith.constant 0.000000e+00 : f32
    %31 = vector.broadcast %cst_34 : f32 to vector<4x4xf32>
    %32 = arith.subf %31, %16 : vector<4x4xf32>
    %cst_35 = arith.constant 8.000000e+00 : f32
    %33 = vector.broadcast %cst_35 : f32 to vector<4x4xf32>
    %34 = arith.mulf %32, %33 : vector<4x4xf32>
    %cst_36 = arith.constant 0.000000e+00 : f32
    %35 = vector.broadcast %cst_36 : f32 to vector<4x4xf32>
    %36 = arith.subf %35, %18 : vector<4x4xf32>
    %cst_37 = arith.constant 8.000000e+00 : f32
    %37 = vector.broadcast %cst_37 : f32 to vector<4x4xf32>
    %38 = arith.mulf %36, %37 : vector<4x4xf32>
    %cst_38 = arith.constant 8.000000e+00 : f32
    %39 = vector.broadcast %cst_38 : f32 to vector<4x4xf32>
    %40 = arith.mulf %20, %39 : vector<4x4xf32>
    %cst_39 = arith.constant 8.000000e+00 : f32
    %41 = vector.broadcast %cst_39 : f32 to vector<4x4xf32>
    %42 = arith.mulf %22, %41 : vector<4x4xf32>
    %cst_40 = arith.constant 0.000000e+00 : f32
    %43 = vector.broadcast %cst_40 : f32 to vector<4x4xf32>
    %44 = arith.subf %43, %24 : vector<4x4xf32>
    %cst_41 = arith.constant 8.000000e+00 : f32
    %45 = vector.broadcast %cst_41 : f32 to vector<4x4xf32>
    %46 = arith.mulf %44, %45 : vector<4x4xf32>
    %cst_42 = arith.constant 0.000000e+00 : f32
    %47 = vector.broadcast %cst_42 : f32 to vector<4x4xf32>
    %48 = arith.subf %47, %26 : vector<4x4xf32>
    %cst_43 = arith.constant 8.000000e+00 : f32
    %49 = vector.broadcast %cst_43 : f32 to vector<4x4xf32>
    %50 = arith.mulf %48, %49 : vector<4x4xf32>
    %cst_44 = arith.constant 8.000000e+00 : f32
    %51 = vector.broadcast %cst_44 : f32 to vector<4x4xf32>
    %52 = arith.mulf %28, %51 : vector<4x4xf32>
    %cst_45 = arith.constant 8.000000e+00 : f32
    %53 = vector.broadcast %cst_45 : f32 to vector<4x4xf32>
    %54 = arith.mulf %30, %53 : vector<4x4xf32>
    %55 = arith.minimumf %40, %52 : vector<4x4xf32>
    %56 = arith.maximumf %34, %46 : vector<4x4xf32>
    %57 = arith.subf %55, %56 : vector<4x4xf32>
    %cst_46 = arith.constant 0.000000e+00 : f32
    %58 = vector.broadcast %cst_46 : f32 to vector<4x4xf32>
    %59 = arith.maximumf %57, %58 : vector<4x4xf32>
    %60 = arith.minimumf %42, %54 : vector<4x4xf32>
    %61 = arith.maximumf %38, %50 : vector<4x4xf32>
    %62 = arith.subf %60, %61 : vector<4x4xf32>
    %cst_47 = arith.constant 0.000000e+00 : f32
    %63 = vector.broadcast %cst_47 : f32 to vector<4x4xf32>
    %64 = arith.maximumf %62, %63 : vector<4x4xf32>
    %65 = arith.mulf %59, %64 : vector<4x4xf32>
    %66 = arith.subf %40, %34 : vector<4x4xf32>
    %67 = arith.subf %42, %38 : vector<4x4xf32>
    %68 = arith.mulf %66, %67 : vector<4x4xf32>
    %69 = arith.subf %52, %46 : vector<4x4xf32>
    %70 = arith.subf %54, %50 : vector<4x4xf32>
    %71 = arith.mulf %69, %70 : vector<4x4xf32>
    %72 = arith.addf %68, %71 : vector<4x4xf32>
    %73 = arith.subf %72, %65 : vector<4x4xf32>
    %cst_48 = arith.constant 1.000000e-07 : f32
    %74 = vector.broadcast %cst_48 : f32 to vector<4x4xf32>
    %75 = arith.addf %73, %74 : vector<4x4xf32>
    %76 = tpu.reciprocal %75 {approx = true} : vector<4x4xf32> -> vector<4x4xf32>
    %77 = arith.mulf %65, %76 : vector<4x4xf32>
    %78 = arith.maximumf %40, %52 : vector<4x4xf32>
    %79 = arith.minimumf %34, %46 : vector<4x4xf32>
    %80 = arith.subf %78, %79 : vector<4x4xf32>
    %81 = arith.maximumf %42, %54 : vector<4x4xf32>
    %82 = arith.minimumf %38, %50 : vector<4x4xf32>
    %83 = arith.subf %81, %82 : vector<4x4xf32>
    %84 = arith.mulf %80, %80 : vector<4x4xf32>
    %85 = arith.mulf %83, %83 : vector<4x4xf32>
    %86 = arith.addf %84, %85 : vector<4x4xf32>
    %cst_49 = arith.constant 1.000000e-07 : f32
    %87 = vector.broadcast %cst_49 : f32 to vector<4x4xf32>
    %88 = arith.addf %86, %87 : vector<4x4xf32>
    %89 = arith.addf %34, %40 : vector<4x4xf32>
    %90 = arith.subf %89, %46 : vector<4x4xf32>
    %91 = arith.subf %90, %52 : vector<4x4xf32>
    %92 = arith.mulf %91, %91 : vector<4x4xf32>
    %93 = arith.addf %38, %42 : vector<4x4xf32>
    %94 = arith.subf %93, %50 : vector<4x4xf32>
    %95 = arith.subf %94, %54 : vector<4x4xf32>
    %96 = arith.mulf %95, %95 : vector<4x4xf32>
    %97 = arith.addf %92, %96 : vector<4x4xf32>
    %cst_50 = arith.constant 2.500000e-01 : f32
    %98 = vector.broadcast %cst_50 : f32 to vector<4x4xf32>
    %99 = arith.mulf %97, %98 : vector<4x4xf32>
    %100 = arith.subf %40, %34 : vector<4x4xf32>
    %101 = arith.subf %42, %38 : vector<4x4xf32>
    %102 = arith.subf %52, %46 : vector<4x4xf32>
    %103 = arith.subf %54, %50 : vector<4x4xf32>
    %cst_51 = arith.constant 1.000000e-07 : f32
    %104 = vector.broadcast %cst_51 : f32 to vector<4x4xf32>
    %105 = arith.addf %103, %104 : vector<4x4xf32>
    %106 = tpu.reciprocal %105 {approx = true} : vector<4x4xf32> -> vector<4x4xf32>
    %107 = arith.mulf %102, %106 : vector<4x4xf32>
    %108 = math.absf %107 : vector<4x4xf32>
    %cst_52 = arith.constant 1.000000e+00 : f32
    %109 = vector.broadcast %cst_52 : f32 to vector<4x4xf32>
    %110 = arith.cmpf ogt, %108, %109 : vector<4x4xf32>
    %cst_53 = arith.constant 1.000000e-30 : f32
    %111 = vector.broadcast %cst_53 : f32 to vector<4x4xf32>
    %112 = arith.maximumf %108, %111 : vector<4x4xf32>
    %113 = tpu.reciprocal %112 {approx = true} : vector<4x4xf32> -> vector<4x4xf32>
    %114 = arith.select %110, %113, %108 : vector<4x4xi1>, vector<4x4xf32>
    %115 = arith.mulf %114, %114 : vector<4x4xf32>
    %cst_54 = arith.constant 2.083510e-02 : f32
    %116 = vector.broadcast %cst_54 : f32 to vector<4x4xf32>
    %117 = arith.mulf %115, %116 : vector<4x4xf32>
    %cst_55 = arith.constant -8.513300e-02 : f32
    %118 = vector.broadcast %cst_55 : f32 to vector<4x4xf32>
    %119 = arith.addf %118, %117 : vector<4x4xf32>
    %120 = arith.mulf %115, %119 : vector<4x4xf32>
    %cst_56 = arith.constant 1.801410e-01 : f32
    %121 = vector.broadcast %cst_56 : f32 to vector<4x4xf32>
    %122 = arith.addf %121, %120 : vector<4x4xf32>
    %123 = arith.mulf %115, %122 : vector<4x4xf32>
    %cst_57 = arith.constant -0.330299497 : f32
    %124 = vector.broadcast %cst_57 : f32 to vector<4x4xf32>
    %125 = arith.addf %124, %123 : vector<4x4xf32>
    %126 = arith.mulf %115, %125 : vector<4x4xf32>
    %cst_58 = arith.constant 9.998660e-01 : f32
    %127 = vector.broadcast %cst_58 : f32 to vector<4x4xf32>
    %128 = arith.addf %127, %126 : vector<4x4xf32>
    %129 = arith.mulf %114, %128 : vector<4x4xf32>
    %cst_59 = arith.constant 1.57079637 : f32
    %130 = vector.broadcast %cst_59 : f32 to vector<4x4xf32>
    %131 = arith.subf %130, %129 : vector<4x4xf32>
    %132 = arith.select %110, %131, %129 : vector<4x4xi1>, vector<4x4xf32>
    %cst_60 = arith.constant 0.000000e+00 : f32
    %133 = vector.broadcast %cst_60 : f32 to vector<4x4xf32>
    %134 = arith.cmpf olt, %107, %133 : vector<4x4xf32>
    %cst_61 = arith.constant 0.000000e+00 : f32
    %135 = vector.broadcast %cst_61 : f32 to vector<4x4xf32>
    %136 = arith.subf %135, %132 : vector<4x4xf32>
    %137 = arith.select %134, %136, %132 : vector<4x4xi1>, vector<4x4xf32>
    %cst_62 = arith.constant 1.000000e-07 : f32
    %138 = vector.broadcast %cst_62 : f32 to vector<4x4xf32>
    %139 = arith.addf %101, %138 : vector<4x4xf32>
    %140 = tpu.reciprocal %139 {approx = true} : vector<4x4xf32> -> vector<4x4xf32>
    %141 = arith.mulf %100, %140 : vector<4x4xf32>
    %142 = math.absf %141 : vector<4x4xf32>
    %cst_63 = arith.constant 1.000000e+00 : f32
    %143 = vector.broadcast %cst_63 : f32 to vector<4x4xf32>
    %144 = arith.cmpf ogt, %142, %143 : vector<4x4xf32>
    %cst_64 = arith.constant 1.000000e-30 : f32
    %145 = vector.broadcast %cst_64 : f32 to vector<4x4xf32>
    %146 = arith.maximumf %142, %145 : vector<4x4xf32>
    %147 = tpu.reciprocal %146 {approx = true} : vector<4x4xf32> -> vector<4x4xf32>
    %148 = arith.select %144, %147, %142 : vector<4x4xi1>, vector<4x4xf32>
    %149 = arith.mulf %148, %148 : vector<4x4xf32>
    %cst_65 = arith.constant 2.083510e-02 : f32
    %150 = vector.broadcast %cst_65 : f32 to vector<4x4xf32>
    %151 = arith.mulf %149, %150 : vector<4x4xf32>
    %cst_66 = arith.constant -8.513300e-02 : f32
    %152 = vector.broadcast %cst_66 : f32 to vector<4x4xf32>
    %153 = arith.addf %152, %151 : vector<4x4xf32>
    %154 = arith.mulf %149, %153 : vector<4x4xf32>
    %cst_67 = arith.constant 1.801410e-01 : f32
    %155 = vector.broadcast %cst_67 : f32 to vector<4x4xf32>
    %156 = arith.addf %155, %154 : vector<4x4xf32>
    %157 = arith.mulf %149, %156 : vector<4x4xf32>
    %cst_68 = arith.constant -0.330299497 : f32
    %158 = vector.broadcast %cst_68 : f32 to vector<4x4xf32>
    %159 = arith.addf %158, %157 : vector<4x4xf32>
    %160 = arith.mulf %149, %159 : vector<4x4xf32>
    %cst_69 = arith.constant 9.998660e-01 : f32
    %161 = vector.broadcast %cst_69 : f32 to vector<4x4xf32>
    %162 = arith.addf %161, %160 : vector<4x4xf32>
    %163 = arith.mulf %148, %162 : vector<4x4xf32>
    %cst_70 = arith.constant 1.57079637 : f32
    %164 = vector.broadcast %cst_70 : f32 to vector<4x4xf32>
    %165 = arith.subf %164, %163 : vector<4x4xf32>
    %166 = arith.select %144, %165, %163 : vector<4x4xi1>, vector<4x4xf32>
    %cst_71 = arith.constant 0.000000e+00 : f32
    %167 = vector.broadcast %cst_71 : f32 to vector<4x4xf32>
    %168 = arith.cmpf olt, %141, %167 : vector<4x4xf32>
    %cst_72 = arith.constant 0.000000e+00 : f32
    %169 = vector.broadcast %cst_72 : f32 to vector<4x4xf32>
    %170 = arith.subf %169, %166 : vector<4x4xf32>
    %171 = arith.select %168, %170, %166 : vector<4x4xi1>, vector<4x4xf32>
    %172 = arith.subf %137, %171 : vector<4x4xf32>
    %cst_73 = arith.constant 0.405284733 : f32
    %173 = vector.broadcast %cst_73 : f32 to vector<4x4xf32>
    %174 = arith.mulf %173, %172 : vector<4x4xf32>
    %175 = arith.mulf %174, %172 : vector<4x4xf32>
    %cst_74 = arith.constant 1.000000e+00 : f32
    %176 = vector.broadcast %cst_74 : f32 to vector<4x4xf32>
    %177 = arith.subf %176, %77 : vector<4x4xf32>
    %178 = arith.addf %177, %175 : vector<4x4xf32>
    %cst_75 = arith.constant 0.000000e+00 : f32
    %179 = vector.broadcast %cst_75 : f32 to vector<4x4xf32>
    %180 = arith.maximumf %178, %179 : vector<4x4xf32>
    %cst_76 = arith.constant 1.000000e-07 : f32
    %181 = vector.broadcast %cst_76 : f32 to vector<4x4xf32>
    %182 = arith.addf %180, %181 : vector<4x4xf32>
    %183 = tpu.reciprocal %182 {approx = true} : vector<4x4xf32> -> vector<4x4xf32>
    %184 = arith.mulf %175, %183 : vector<4x4xf32>
    %cst_77 = arith.constant 1.000000e+00 : f32
    %185 = vector.broadcast %cst_77 : f32 to vector<4x4xf32>
    %186 = arith.subf %185, %77 : vector<4x4xf32>
    %187 = tpu.reciprocal %88 {approx = true} : vector<4x4xf32> -> vector<4x4xf32>
    %188 = arith.mulf %99, %187 : vector<4x4xf32>
    %189 = arith.addf %186, %188 : vector<4x4xf32>
    %190 = arith.mulf %184, %175 : vector<4x4xf32>
    %191 = arith.addf %189, %190 : vector<4x4xf32>
    %c0_78 = arith.constant 0 : index
    %c4 = arith.constant 4 : index
    %c0_79 = arith.constant 0 : index
    %c0_80 = arith.constant 0 : index
    %192 = vector.load %arg2[%c0_78, %c4, %c0_79, %c0_80] : memref<1x9x4x4xf32, #tpu.memory_space<vmem>>, vector<1x1x4x4xf32>
    %193 = vector.shape_cast %192 : vector<1x1x4x4xf32> to vector<4x4xf32>
    %c0_81 = arith.constant 0 : index
    %c4_82 = arith.constant 4 : index
    %c0_83 = arith.constant 0 : index
    %c0_84 = arith.constant 0 : index
    %194 = vector.load %arg3[%c0_81, %c4_82, %c0_83, %c0_84] : memref<1x9x4x4xf32, #tpu.memory_space<vmem>>, vector<1x1x4x4xf32>
    %195 = vector.shape_cast %194 : vector<1x1x4x4xf32> to vector<4x4xf32>
    %cst_85 = arith.constant 0.000000e+00 : f32
    %196 = vector.broadcast %cst_85 : f32 to vector<4x4xf32>
    %197 = arith.maximumf %193, %196 : vector<4x4xf32>
    %198 = arith.mulf %193, %195 : vector<4x4xf32>
    %199 = arith.subf %197, %198 : vector<4x4xf32>
    %200 = math.absf %193 : vector<4x4xf32>
    %cst_86 = arith.constant 0.000000e+00 : f32
    %201 = vector.broadcast %cst_86 : f32 to vector<4x4xf32>
    %202 = arith.subf %201, %200 : vector<4x4xf32>
    %203 = math.exp %202 : vector<4x4xf32>
    %cst_87 = arith.constant 1.000000e+00 : f32
    %204 = vector.broadcast %cst_87 : f32 to vector<4x4xf32>
    %205 = arith.addf %204, %203 : vector<4x4xf32>
    %206 = math.log %205 : vector<4x4xf32>
    %207 = arith.addf %199, %206 : vector<4x4xf32>
    %c0_88 = arith.constant 0 : index
    %c5 = arith.constant 5 : index
    %c0_89 = arith.constant 0 : index
    %c0_90 = arith.constant 0 : index
    %208 = vector.load %arg2[%c0_88, %c5, %c0_89, %c0_90] : memref<1x9x4x4xf32, #tpu.memory_space<vmem>>, vector<1x4x4x4xf32>
    %209 = vector.shape_cast %208 : vector<1x4x4x4xf32> to vector<4x4x4xf32>
    %c0_91 = arith.constant 0 : index
    %c5_92 = arith.constant 5 : index
    %c0_93 = arith.constant 0 : index
    %c0_94 = arith.constant 0 : index
    %210 = vector.load %arg3[%c0_91, %c5_92, %c0_93, %c0_94] : memref<1x9x4x4xf32, #tpu.memory_space<vmem>>, vector<1x4x4x4xf32>
    %211 = vector.shape_cast %210 : vector<1x4x4x4xf32> to vector<4x4x4xf32>
    %212 = math.absf %209 : vector<4x4x4xf32>
    %cst_95 = arith.constant 0.000000e+00 : f32
    %213 = vector.broadcast %cst_95 : f32 to vector<4x4x4xf32>
    %214 = arith.subf %213, %212 : vector<4x4x4xf32>
    %215 = math.exp %214 : vector<4x4x4xf32>
    %cst_96 = arith.constant 1.000000e+00 : f32
    %216 = vector.broadcast %cst_96 : f32 to vector<4x4x4xf32>
    %217 = arith.addf %216, %215 : vector<4x4x4xf32>
    %218 = tpu.reciprocal %217 {approx = true} : vector<4x4x4xf32> -> vector<4x4x4xf32>
    %cst_97 = arith.constant 0.000000e+00 : f32
    %219 = vector.broadcast %cst_97 : f32 to vector<4x4x4xf32>
    %220 = arith.cmpf oge, %209, %219 : vector<4x4x4xf32>
    %221 = arith.mulf %215, %218 : vector<4x4x4xf32>
    %222 = arith.select %220, %218, %221 : vector<4x4x4xi1>, vector<4x4x4xf32>
    %cst_98 = arith.constant 0.000000e+00 : f32
    %223 = vector.broadcast %cst_98 : f32 to vector<4x4x4xf32>
    %224 = arith.maximumf %209, %223 : vector<4x4x4xf32>
    %225 = arith.mulf %209, %211 : vector<4x4x4xf32>
    %226 = arith.subf %224, %225 : vector<4x4x4xf32>
    %cst_99 = arith.constant 1.000000e+00 : f32
    %227 = vector.broadcast %cst_99 : f32 to vector<4x4x4xf32>
    %228 = arith.addf %227, %215 : vector<4x4x4xf32>
    %229 = math.log %228 : vector<4x4x4xf32>
    %230 = arith.addf %226, %229 : vector<4x4x4xf32>
    %231 = arith.mulf %222, %211 : vector<4x4x4xf32>
    %cst_100 = arith.constant 1.000000e+00 : f32
    %232 = vector.broadcast %cst_100 : f32 to vector<4x4x4xf32>
    %233 = arith.subf %232, %222 : vector<4x4x4xf32>
    %cst_101 = arith.constant 1.000000e+00 : f32
    %234 = vector.broadcast %cst_101 : f32 to vector<4x4x4xf32>
    %235 = arith.subf %234, %211 : vector<4x4x4xf32>
    %236 = arith.mulf %233, %235 : vector<4x4x4xf32>
    %237 = arith.addf %231, %236 : vector<4x4x4xf32>
    %cst_102 = arith.constant 2.500000e-01 : f32
    %238 = vector.broadcast %cst_102 : f32 to vector<4x4x4xf32>
    %239 = arith.mulf %238, %211 : vector<4x4x4xf32>
    %cst_103 = arith.constant 1.000000e+00 : f32
    %240 = vector.broadcast %cst_103 : f32 to vector<4x4x4xf32>
    %241 = arith.subf %240, %211 : vector<4x4x4xf32>
    %cst_104 = arith.constant 7.500000e-01 : f32
    %242 = vector.broadcast %cst_104 : f32 to vector<4x4x4xf32>
    %243 = arith.mulf %242, %241 : vector<4x4x4xf32>
    %244 = arith.addf %239, %243 : vector<4x4x4xf32>
    %cst_105 = arith.constant 1.000000e+00 : f32
    %245 = vector.broadcast %cst_105 : f32 to vector<4x4x4xf32>
    %246 = arith.subf %245, %237 : vector<4x4x4xf32>
    %247 = arith.mulf %244, %230 : vector<4x4x4xf32>
    %248 = arith.mulf %247, %246 : vector<4x4x4xf32>
    %249 = arith.mulf %248, %246 : vector<4x4x4xf32>
    %cst_106 = arith.constant dense<0.000000e+00> : vector<4x4xf32>
    %250 = vector.multi_reduction <add>, %249, %cst_106 [0] : vector<4x4x4xf32> to vector<4x4xf32>
    %c0_107 = arith.constant 0 : index
    %c0_108 = arith.constant 0 : index
    %251 = vector.load %arg5[%c0_107, %c0_108] : memref<4x4xf32, #tpu.memory_space<vmem>>, vector<4x4xf32>
    %cst_109 = arith.constant 0.000000e+00 : f32
    %252 = vector.broadcast %cst_109 : f32 to vector<4x4xf32>
    %253 = arith.select %14, %191, %252 : vector<4x4xi1>, vector<4x4xf32>
    %254 = arith.addf %251, %253 : vector<4x4xf32>
    %c0_110 = arith.constant 0 : index
    %c0_111 = arith.constant 0 : index
    %255 = vector.load %arg5[%c0_110, %c0_111] : memref<4x4xf32, #tpu.memory_space<vmem>>, vector<4x4xf32>
    tpu.vector_store %arg5[%c0_110, %c0_111], %254 {strides = array<i32>} : memref<4x4xf32, #tpu.memory_space<vmem>>, vector<4x4xf32>,
    %c0_112 = arith.constant 0 : index
    %c0_113 = arith.constant 0 : index
    %256 = vector.load %arg6[%c0_112, %c0_113] : memref<4x4xf32, #tpu.memory_space<vmem>>, vector<4x4xf32>
    %cst_114 = arith.constant 0.000000e+00 : f32
    %257 = vector.broadcast %cst_114 : f32 to vector<4x4xf32>
    %258 = arith.select %14, %207, %257 : vector<4x4xi1>, vector<4x4xf32>
    %259 = arith.addf %256, %258 : vector<4x4xf32>
    %c0_115 = arith.constant 0 : index
    %c0_116 = arith.constant 0 : index
    %260 = vector.load %arg6[%c0_115, %c0_116] : memref<4x4xf32, #tpu.memory_space<vmem>>, vector<4x4xf32>
    tpu.vector_store %arg6[%c0_115, %c0_116], %259 {strides = array<i32>} : memref<4x4xf32, #tpu.memory_space<vmem>>, vector<4x4xf32>,
    %c0_117 = arith.constant 0 : index
    %c0_118 = arith.constant 0 : index
    %261 = vector.load %arg7[%c0_117, %c0_118] : memref<4x4xf32, #tpu.memory_space<vmem>>, vector<4x4xf32>
    %cst_119 = arith.constant 0.000000e+00 : f32
    %262 = vector.broadcast %cst_119 : f32 to vector<4x4xf32>
    %263 = arith.select %8, %250, %262 : vector<4x4xi1>, vector<4x4xf32>
    %264 = arith.addf %261, %263 : vector<4x4xf32>
    %c0_120 = arith.constant 0 : index
    %c0_121 = arith.constant 0 : index
    %265 = vector.load %arg7[%c0_120, %c0_121] : memref<4x4xf32, #tpu.memory_space<vmem>>, vector<4x4xf32>
    tpu.vector_store %arg7[%c0_120, %c0_121], %264 {strides = array<i32>} : memref<4x4xf32, #tpu.memory_space<vmem>>, vector<4x4xf32>,
    %c0_122 = arith.constant 0 : index
    %c0_123 = arith.constant 0 : index
    %266 = vector.load %arg8[%c0_122, %c0_123] : memref<4x4xf32, #tpu.memory_space<vmem>>, vector<4x4xf32>
    %cst_124 = arith.constant 0.000000e+00 : f32
    %267 = vector.broadcast %cst_124 : f32 to vector<4x4xf32>
    %268 = arith.select %8, %195, %267 : vector<4x4xi1>, vector<4x4xf32>
    %269 = arith.addf %266, %268 : vector<4x4xf32>
    %c0_125 = arith.constant 0 : index
    %c0_126 = arith.constant 0 : index
    %270 = vector.load %arg8[%c0_125, %c0_126] : memref<4x4xf32, #tpu.memory_space<vmem>>, vector<4x4xf32>
    tpu.vector_store %arg8[%c0_125, %c0_126], %269 {strides = array<i32>} : memref<4x4xf32, #tpu.memory_space<vmem>>, vector<4x4xf32>,
    %c0_127 = arith.constant 0 : index
    %c0_128 = arith.constant 0 : index
    %271 = vector.load %arg9[%c0_127, %c0_128] : memref<4x4xf32, #tpu.memory_space<vmem>>, vector<4x4xf32>
    %cst_129 = arith.constant 1.000000e+00 : f32
    %cst_130 = arith.constant 0.000000e+00 : f32
    %272 = vector.broadcast %cst_129 : f32 to vector<4x4xf32>
    %273 = vector.broadcast %cst_130 : f32 to vector<4x4xf32>
    %274 = arith.select %14, %272, %273 : vector<4x4xi1>, vector<4x4xf32>
    %275 = arith.addf %271, %274 : vector<4x4xf32>
    %c0_131 = arith.constant 0 : index
    %c0_132 = arith.constant 0 : index
    %276 = vector.load %arg9[%c0_131, %c0_132] : memref<4x4xf32, #tpu.memory_space<vmem>>, vector<4x4xf32>
    tpu.vector_store %arg9[%c0_131, %c0_132], %275 {strides = array<i32>} : memref<4x4xf32, #tpu.memory_space<vmem>>, vector<4x4xf32>,
    %c0_i32_133 = arith.constant 0 : i32
    %277 = arith.cmpi eq, %arg1, %c0_i32_133 : i32
    %278 = arith.extui %277 : i1 to i32
    %c0_i32_134 = arith.constant 0 : i32
    %279 = arith.cmpi ne, %278, %c0_i32_134 : i32
    scf.if %279 {
      %280 = tpu.iota {dimensions = array<i32: 0>} : vector<8x128xi32>
      %c0_i32_135 = arith.constant 0 : i32
      %281 = vector.broadcast %c0_i32_135 : i32 to vector<8x128xi32>
      %282 = arith.cmpi eq, %280, %281 : vector<8x128xi32>
      %c0_136 = arith.constant 0 : index
      %c0_137 = arith.constant 0 : index
      %283 = vector.load %arg5[%c0_136, %c0_137] : memref<4x4xf32, #tpu.memory_space<vmem>>, vector<4x4xf32>
      %284 = vector.shape_cast %283 : vector<4x4xf32> to vector<1x4x4xf32>
      %cst_138 = arith.constant dense<0.000000e+00> : vector<1xf32>
      %285 = vector.multi_reduction <add>, %284, %cst_138 [1, 2] : vector<1x4x4xf32> to vector<1xf32>
      %286 = vector.shape_cast %285 : vector<1xf32> to vector<1x1x1xf32>
      %287 = vector.extract %286[0, 0, 0] : f32 from vector<1x1x1xf32>
      %cst_139 = arith.constant 0.000000e+00 : f32
      %288 = vector.broadcast %287 : f32 to vector<8x128xf32>
      %289 = vector.broadcast %cst_139 : f32 to vector<8x128xf32>
      %290 = arith.select %282, %288, %289 : vector<8x128xi1>, vector<8x128xf32>
      %c1_i32 = arith.constant 1 : i32
      %291 = vector.broadcast %c1_i32 : i32 to vector<8x128xi32>
      %292 = arith.cmpi eq, %280, %291 : vector<8x128xi32>
      %c0_140 = arith.constant 0 : index
      %c0_141 = arith.constant 0 : index
      %293 = vector.load %arg6[%c0_140, %c0_141] : memref<4x4xf32, #tpu.memory_space<vmem>>, vector<4x4xf32>
      %294 = vector.shape_cast %293 : vector<4x4xf32> to vector<1x4x4xf32>
      %cst_142 = arith.constant dense<0.000000e+00> : vector<1xf32>
      %295 = vector.multi_reduction <add>, %294, %cst_142 [1, 2] : vector<1x4x4xf32> to vector<1xf32>
      %296 = vector.shape_cast %295 : vector<1xf32> to vector<1x1x1xf32>
      %297 = vector.extract %296[0, 0, 0] : f32 from vector<1x1x1xf32>
      %cst_143 = arith.constant 0.000000e+00 : f32
      %298 = vector.broadcast %297 : f32 to vector<8x128xf32>
      %299 = vector.broadcast %cst_143 : f32 to vector<8x128xf32>
      %300 = arith.select %292, %298, %299 : vector<8x128xi1>, vector<8x128xf32>
      %301 = arith.addf %290, %300 : vector<8x128xf32>
      %c2_i32 = arith.constant 2 : i32
      %302 = vector.broadcast %c2_i32 : i32 to vector<8x128xi32>
      %303 = arith.cmpi eq, %280, %302 : vector<8x128xi32>
      %c0_144 = arith.constant 0 : index
      %c0_145 = arith.constant 0 : index
      %304 = vector.load %arg7[%c0_144, %c0_145] : memref<4x4xf32, #tpu.memory_space<vmem>>, vector<4x4xf32>
      %305 = vector.shape_cast %304 : vector<4x4xf32> to vector<1x4x4xf32>
      %cst_146 = arith.constant dense<0.000000e+00> : vector<1xf32>
      %306 = vector.multi_reduction <add>, %305, %cst_146 [1, 2] : vector<1x4x4xf32> to vector<1xf32>
      %307 = vector.shape_cast %306 : vector<1xf32> to vector<1x1x1xf32>
      %308 = vector.extract %307[0, 0, 0] : f32 from vector<1x1x1xf32>
      %cst_147 = arith.constant 0.000000e+00 : f32
      %309 = vector.broadcast %308 : f32 to vector<8x128xf32>
      %310 = vector.broadcast %cst_147 : f32 to vector<8x128xf32>
      %311 = arith.select %303, %309, %310 : vector<8x128xi1>, vector<8x128xf32>
      %312 = arith.addf %301, %311 : vector<8x128xf32>
      %c3_i32 = arith.constant 3 : i32
      %313 = vector.broadcast %c3_i32 : i32 to vector<8x128xi32>
      %314 = arith.cmpi eq, %280, %313 : vector<8x128xi32>
      %c0_148 = arith.constant 0 : index
      %c0_149 = arith.constant 0 : index
      %315 = vector.load %arg8[%c0_148, %c0_149] : memref<4x4xf32, #tpu.memory_space<vmem>>, vector<4x4xf32>
      %316 = vector.shape_cast %315 : vector<4x4xf32> to vector<1x4x4xf32>
      %cst_150 = arith.constant dense<0.000000e+00> : vector<1xf32>
      %317 = vector.multi_reduction <add>, %316, %cst_150 [1, 2] : vector<1x4x4xf32> to vector<1xf32>
      %318 = vector.shape_cast %317 : vector<1xf32> to vector<1x1x1xf32>
      %319 = vector.extract %318[0, 0, 0] : f32 from vector<1x1x1xf32>
      %cst_151 = arith.constant 0.000000e+00 : f32
      %320 = vector.broadcast %319 : f32 to vector<8x128xf32>
      %321 = vector.broadcast %cst_151 : f32 to vector<8x128xf32>
      %322 = arith.select %314, %320, %321 : vector<8x128xi1>, vector<8x128xf32>
      %323 = arith.addf %312, %322 : vector<8x128xf32>
      %c4_i32_152 = arith.constant 4 : i32
      %324 = vector.broadcast %c4_i32_152 : i32 to vector<8x128xi32>
      %325 = arith.cmpi eq, %280, %324 : vector<8x128xi32>
      %c0_153 = arith.constant 0 : index
      %c0_154 = arith.constant 0 : index
      %326 = vector.load %arg9[%c0_153, %c0_154] : memref<4x4xf32, #tpu.memory_space<vmem>>, vector<4x4xf32>
      %327 = vector.shape_cast %326 : vector<4x4xf32> to vector<1x4x4xf32>
      %cst_155 = arith.constant dense<0.000000e+00> : vector<1xf32>
      %328 = vector.multi_reduction <add>, %327, %cst_155 [1, 2] : vector<1x4x4xf32> to vector<1xf32>
      %329 = vector.shape_cast %328 : vector<1xf32> to vector<1x1x1xf32>
      %330 = vector.extract %329[0, 0, 0] : f32 from vector<1x1x1xf32>
      %cst_156 = arith.constant 0.000000e+00 : f32
      %331 = vector.broadcast %330 : f32 to vector<8x128xf32>
      %332 = vector.broadcast %cst_156 : f32 to vector<8x128xf32>
      %333 = arith.select %325, %331, %332 : vector<8x128xi1>, vector<8x128xf32>
      %334 = arith.addf %323, %333 : vector<8x128xf32>
      %c0_157 = arith.constant 0 : index
      %c0_158 = arith.constant 0 : index
      %c0_159 = arith.constant 0 : index
      %335 = vector.load %arg4[%c0_157, %c0_158, %c0_159] : memref<1x8x128xf32, #tpu.memory_space<vmem>>, vector<1x8x128xf32>
      %336 = vector.shape_cast %335 : vector<1x8x128xf32> to vector<8x128xf32>
      %337 = vector.shape_cast %334 : vector<8x128xf32> to vector<1x8x128xf32>
      tpu.vector_store %arg4[%c0_157, %c0_158, %c0_159], %337 {strides = array<i32>} : memref<1x8x128xf32, #tpu.memory_space<vmem>>, vector<1x8x128xf32>,
    } else {
    }
    return
  }
  func.func @transform_0(%arg0: i32, %arg1: i32) -> (i32, i32, i32, i32) {
    %c0_i32 = arith.constant 0 : i32
    %c0_i32_0 = arith.constant 0 : i32
    %c0_i32_1 = arith.constant 0 : i32
    return %arg0, %c0_i32, %arg1, %c0_i32_0 : i32, i32, i32, i32
  }
  func.func @transform_1(%arg0: i32, %arg1: i32) -> (i32, i32, i32, i32) {
    %c0_i32 = arith.constant 0 : i32
    %c0_i32_0 = arith.constant 0 : i32
    %c0_i32_1 = arith.constant 0 : i32
    return %arg0, %c0_i32, %arg1, %c0_i32_0 : i32, i32, i32, i32
  }
  func.func @transform_2(%arg0: i32, %arg1: i32) -> (i32, i32, i32) {
    %c0_i32 = arith.constant 0 : i32
    %c0_i32_0 = arith.constant 0 : i32
    %c0_i32_1 = arith.constant 0 : i32
    return %arg0, %c0_i32, %c0_i32_0 : i32, i32, i32
  }
}

</mosaic_0001>

<llo_original>
// kernel: tpu_custom_call.1
$region0: #{tpu_custom_call.1}
  #allocation0 [shape = 'u32[]', space=smem, size = 0x4, offset = 0x4, fixed_abs, tag = 'smem constant byte address 0x4 - core index']
  #allocation1 [shape = 'u32[144,128]{1,0:T(1,128)}', space=vmem, size = 0x12000, scoped, tag = 'internal scratch']
  #allocation2 [shape = 'f32[4,4]{1,0:T(4,128)}', space=vmem, size = 0x800, scoped, tag = 'scratch operand']
  #allocation3 [shape = 'f32[4,4]{1,0:T(4,128)}', space=vmem, size = 0x800, scoped, tag = 'scratch operand']
  #allocation4 [shape = 'f32[4,4]{1,0:T(4,128)}', space=vmem, size = 0x800, scoped, tag = 'scratch operand']
  #allocation5 [shape = 'f32[4,4]{1,0:T(4,128)}', space=vmem, size = 0x800, scoped, tag = 'scratch operand']
  #allocation6 [shape = 'f32[4,4]{1,0:T(4,128)}', space=vmem, size = 0x800, scoped, tag = 'scratch operand']
  %s0 = inlined_call_operand.vmem [shape: f32[2,9,4,4], index: 0, kind: input, shape index: {}]
  %s1 = inlined_call_operand.vmem [shape: f32[2,9,4,4], index: 1, kind: input, shape index: {}]
  %s2 = inlined_call_operand.hbm [shape: f32[2,8,128], index: 2, kind: output, shape index: {}]
  %s3 = sld [smem:[#allocation0]]
  $region49: #{tpu_custom_call.1} parent=0
    _
  %s5 = ssub.s32 1, %s3
  %s6 = scalar_select 0, %s5, %s3
  $region1: #{tpu_custom_call.1} parent=0
    #allocation7 [shape = 'u8[8192]{0}', space=vmem, size = 0x2000, scoped, tag = 'output window, operand 0']
    #allocation8 [shape = 's32[2]{0}', space=sflag, size = 0x8, scoped, tag = 'scoped memory for tpu_custom_call.1']
    %7 = vsyncpa [#allocation8], 0
    %s8 = scalar_lea.sflag [#allocation8], 1
    %9 = vsyncpa %s8, 0
    loop: start=0, step=1, limit=4
    $region2: #{tpu_custom_call.1} parent=1 // loop_pre_header
      _
    $region3: #{tpu_custom_call.1} parent=1 // loop_header
      %s11 = sphi 0, %s15
      %p12 = scmp.ge.s32.totalorder %s11, 4
      %s18 = sphi 0, %s30
      %s19 = sphi 0, %s26
      %s20 = sphi 0, %s18
      %s21 = sphi 0, %s19
      %s22 = sphi 0, %s20
      %s23 = sphi 0, %s21
      %s35 = sphi 0, %s37
      %s38 = sphi 0, %s35
      %s39 = sphi 0, %s38
      %s55 = sphi 0, %s39
      %s63 = sphi 0, %s65
      %s66 = sphi 0, %s63
      %s67 = sphi 0, %s66
      %s83 = sphi 0, %s67
      %s89 = sphi 0, %s91
      %s92 = sphi 0, %s89
      %s93 = sphi 0, %s92
      %s109 = sphi 0, %s93
    $region4: #{tpu_custom_call.1} parent=1 // loop_header_branch
      %14 = sbr.rel (%p12) target = $region8
    $region5: #{tpu_custom_call.1} parent=1 // loop_body
      %s16 = ssub.s32 %s11, 1
      %s17 = ssub.s32 %s11, 2
      %s24 = sadd.s32 1, %s19
      %p25 = scmp.ge.s32.totalorder %s24, 1
      %s26 = scalar_select %p25, 0, %s24
      %s27 = sadd.s32 1, %s18
      %s28 = scalar_select %p25, %s27, %s18
      %p29 = scmp.ge.s32.totalorder %s28, 2
      %s30 = scalar_select %p29, 0, %s28
      %s31 = ssub.s32 %s18, %s30
      %s32 = ssub.s32 %s19, %s26
      %s33 = sor.u32 %s31, %s32
      %p34 = scmp.eq.s32.totalorder %s33, 0
      %s36 = sadd.s32 %s35, 1
      %s37 = scalar_select %p34, %s35, %s36
      %p40 = pneg %p34
      %p41 = scmp.eq.s32.totalorder %s11, 1
      %p42 = por %p40, %p41
      %p43 = scmp.ne.s32.totalorder %s35, %s38
      %p44 = scmp.eq.s32.totalorder %s11, 0
      %p45 = por %p43, %p44
      %p46 = scmp.ne.s32.totalorder %s35, %s38
      %p47 = scmp.eq.s32.totalorder %s16, 1
      %p48 = por %p46, %p47
      %p49 = scmp.ne.s32.totalorder %s38, %s39
      %p50 = scmp.eq.s32.totalorder %s16, 0
      %p51 = por %p49, %p50
      %p52 = scmp.ne.s32.totalorder %s38, %s39
      %p53 = scmp.eq.s32.totalorder %s17, 1
      %p54 = por %p52, %p53
      %p56 = scmp.ne.s32.totalorder %s39, %s55
      %p57 = scmp.eq.s32.totalorder %s17, 0
      %p58 = por %p56, %p57
      %s59 = ssub.s32 %s18, %s30
      %s60 = ssub.s32 %s19, %s26
      %s61 = sor.u32 %s59, %s60
      %p62 = scmp.eq.s32.totalorder %s61, 0
      %s64 = sadd.s32 %s63, 1
      %s65 = scalar_select %p62, %s63, %s64
      %p68 = pneg %p62
      %p69 = scmp.eq.s32.totalorder %s11, 1
      %p70 = por %p68, %p69
      %p71 = scmp.ne.s32.totalorder %s63, %s66
      %p72 = scmp.eq.s32.totalorder %s11, 0
      %p73 = por %p71, %p72
      %p74 = scmp.ne.s32.totalorder %s63, %s66
      %p75 = scmp.eq.s32.totalorder %s16, 1
      %p76 = por %p74, %p75
      %p77 = scmp.ne.s32.totalorder %s66, %s67
      %p78 = scmp.eq.s32.totalorder %s16, 0
      %p79 = por %p77, %p78
      %p80 = scmp.ne.s32.totalorder %s66, %s67
      %p81 = scmp.eq.s32.totalorder %s17, 1
      %p82 = por %p80, %p81
      %p84 = scmp.ne.s32.totalorder %s67, %s83
      %p85 = scmp.eq.s32.totalorder %s17, 0
      %p86 = por %p84, %p85
      %s87 = ssub.s32 %s18, %s30
      %p88 = scmp.eq.s32.totalorder %s87, 0
      %s90 = sadd.s32 %s89, 1
      %s91 = scalar_select %p88, %s89, %s90
      %p94 = pneg %p88
      %p95 = scmp.eq.s32.totalorder %s11, 1
      %p96 = por %p94, %p95
      %p97 = scmp.ne.s32.totalorder %s89, %s92
      %p98 = scmp.eq.s32.totalorder %s11, 0
      %p99 = por %p97, %p98
      %p100 = scmp.ne.s32.totalorder %s89, %s92
      %p101 = scmp.eq.s32.totalorder %s16, 1
      %p102 = por %p100, %p101
      %p103 = scmp.ne.s32.totalorder %s92, %s93
      %p104 = scmp.eq.s32.totalorder %s16, 0
      %p105 = por %p103, %p104
      %p106 = scmp.ne.s32.totalorder %s92, %s93
      %p107 = scmp.eq.s32.totalorder %s17, 1
      %p108 = por %p106, %p107
      %p110 = scmp.ne.s32.totalorder %s93, %s109
      %p111 = scmp.eq.s32.totalorder %s17, 0
      %p112 = por %p110, %p111
      %p113 = scmp.le.s32.totalorder 1, %s11
      %p114 = scmp.lt.s32.totalorder %s11, 3
      %p115 = pnand %p113, %p114
      %p116 = pneg %p115
      // Predicated region
      $region9: #{tpu_custom_call.1} parent=5 // pred_check
        _
      $region10: #{tpu_custom_call.1} parent=5 // pred_check_branch
        %118 = sbr.rel (%p115) target = $region12
      $region11: #{tpu_custom_call.1} parent=5 // pred_region
        %s119 = ssub.s32 %s11, 1
      $region12: #{tpu_custom_call.1} parent=5 // pred_fallthru
        _
      %p120 = scmp.lt.s32.totalorder %s11, 2
      // Predicated region
      $region13: #{tpu_custom_call.1} parent=5 // pred_check
        %p121 = pneg %p120
      $region14: #{tpu_custom_call.1} parent=5 // pred_check_branch
        %123 = sbr.rel (%p121) target = $region16
      $region15: #{tpu_custom_call.1} parent=5 // pred_region
        // Predicated region
        $region17: #{tpu_custom_call.1} parent=15 // pred_check
          %p124 = pneg %p45
        $region18: #{tpu_custom_call.1} parent=15 // pred_check_branch
          %126 = sbr.rel (%p124) target = $region20
        $region19: #{tpu_custom_call.1} parent=15 // pred_region
          %p127 = scmp.lt.s32.totalorder %s18, 1
          %s128 = scalar_select %p127, %s18, 1
          %p129 = scmp.lt.s32.totalorder %s19, 0
          %s130 = scalar_select %p129, %s19, 0
          %s131 = smul.addr %s128, 9
          %s132 = sadd.s32 %s130, %s131
          %s133 = smul.addr %s132, 4
          %s134 = scalar_lea.vmem %s0, %s133
        $region20: #{tpu_custom_call.1} parent=15 // pred_fallthru
          _
        // Predicated region
        $region21: #{tpu_custom_call.1} parent=15 // pred_check
          %p135 = pneg %p73
        $region22: #{tpu_custom_call.1} parent=15 // pred_check_branch
          %137 = sbr.rel (%p135) target = $region24
        $region23: #{tpu_custom_call.1} parent=15 // pred_region
          %p138 = scmp.lt.s32.totalorder %s18, 1
          %s139 = scalar_select %p138, %s18, 1
          %p140 = scmp.lt.s32.totalorder %s19, 0
          %s141 = scalar_select %p140, %s19, 0
          %s142 = smul.addr %s139, 9
          %s143 = sadd.s32 %s141, %s142
          %s144 = smul.addr %s143, 4
          %s145 = scalar_lea.vmem %s1, %s144
        $region24: #{tpu_custom_call.1} parent=15 // pred_fallthru
          _
      $region16: #{tpu_custom_call.1} parent=5 // pred_fallthru
        _
      %p146 = scmp.le.s32.totalorder 1, %s11
      %p147 = scmp.lt.s32.totalorder %s11, 3
      %p148 = pnand %p146, %p147
      %p149 = pneg %p148
      // Predicated region
      $region25: #{tpu_custom_call.1} parent=5 // pred_check
        _
      $region26: #{tpu_custom_call.1} parent=5 // pred_check_branch
        %151 = sbr.rel (%p148) target = $region28
      $region27: #{tpu_custom_call.1} parent=5 // pred_region
        %s152 = ssub.s32 %s11, 1
        %p153 = scmp.lt.s32.totalorder %s20, 1
        %s154 = scalar_select %p153, %s20, 1
        %p155 = scmp.lt.s32.totalorder %s21, 0
        %s156 = scalar_select %p155, %s21, 0
        %s157 = smul.addr %s154, 9
        %s158 = sadd.s32 %s156, %s157
        %s159 = smul.addr %s158, 4
        %s160 = scalar_lea.vmem %s0, %s159
        %p161 = pneg %p51
        %p162 = pneg %p48
        %p163 = scmp.lt.s32.totalorder %s20, 1
        %s164 = scalar_select %p163, %s20, 1
        %p165 = scmp.lt.s32.totalorder %s21, 0
        %s166 = scalar_select %p165, %s21, 0
        %s167 = smul.addr %s164, 9
        %s168 = sadd.s32 %s166, %s167
        %s169 = smul.addr %s168, 4
        %s170 = scalar_lea.vmem %s1, %s169
        %p171 = pneg %p79
        %p172 = pneg %p76
        %p173 = pneg %p105
        %p174 = pneg %p102
        %s175 = sand.u32 %s92, 1
        %s176 = scalar_lea.sflag [#allocation8], %s175
        %s177 = sand.u32 %s92, 1
        %s178 = smul.addr %s177, 8
        %s179 = scalar_lea.vmem [#allocation7], %s178
        %p180 = scmp.lt.s32.totalorder %s20, 1
        %s181 = scalar_select %p180, %s20, 1
        %p182 = scmp.lt.s32.totalorder %s21, 0
        %s183 = scalar_select %p182, %s21, 0
        %s184 = smul.addr %s181, 9
        %s185 = sadd.s32 %s183, %s184
        %s186 = smul.addr %s185, 4
        %s187 = scalar_lea.vmem %s0, %s186
        %p188 = scmp.lt.s32.totalorder %s20, 1
        %s189 = scalar_select %p188, %s20, 1
        %p190 = scmp.lt.s32.totalorder %s21, 0
        %s191 = scalar_select %p190, %s21, 0
        %s192 = smul.addr %s189, 9
        %s193 = sadd.s32 %s191, %s192
        %s194 = smul.addr %s193, 4
        %s195 = scalar_lea.vmem %s1, %s194
        %p196 = scmp.eq.s32.totalorder %s21, 0
        // Predicated region
        $region29: #{tpu_custom_call.1} parent=27 // pred_check
          %p197 = pneg %p196
        $region30: #{tpu_custom_call.1} parent=27 // pred_check_branch
          %199 = sbr.rel (%p197) target = $region32
        $region31: #{tpu_custom_call.1} parent=27 // pred_region
          %vm200 = vcmask 27648
          %201 = vst.msk [vmem:[#allocation2] sm:$0xf] %vm200, 0.0
          %202 = vst.msk [vmem:[#allocation3] sm:$0xf] %vm200, 0.0
          %203 = vst.msk [vmem:[#allocation4] sm:$0xf] %vm200, 0.0
          %204 = vst.msk [vmem:[#allocation5] sm:$0xf] %vm200, 0.0
          %205 = vst.msk [vmem:[#allocation6] sm:$0xf] %vm200, 0.0
        $region32: #{tpu_custom_call.1} parent=27 // pred_fallthru
          _
        %v206 = vlaneseq
        %v207 = vshrl.u32 %v206, 7
        %s208 = smul.u32 %s21, 4
        %v209 = vstv %s208
        %v210 = vadd.s32 %v207, %v209
        %vm211 = vcmp.lt.s32.totalorder %v210, 4
        %s212 = scalar_lea.vmem %s195, 24
        %v213 = vld [vmem:[%s212] sm:$0xf]
        %v214 = vld [vmem:[%s212 + $0x4] sm:$0xf]
        %v215 = vld [vmem:[%s212 + $0x8] sm:$0xf]
        %vm216 = vcmask 27648
        %v217 = vsel %vm216, %v213, -inf
        %v218 = vsel %vm216, %v214, -inf
        %v219 = vsel %vm216, %v215, -inf
        %v220 = vmax.f32 %v217, %v218
        %v221 = vmax.f32 %v220, %v219
        %vm222 = vcmp.ne.f32.partialorder %v221, 0.0
        %vm223 = vmand %vm222, %vm211
        %v224 = vld [vmem:[%s187] sm:$0xf]
        %s225 = scalar_lea.vmem %s187, 4
        %v226 = vld [vmem:[%s225] sm:$0xf]
        %s227 = scalar_lea.vmem %s187, 8
        %v228 = vld [vmem:[%s227] sm:$0xf]
        %s229 = scalar_lea.vmem %s187, 12
        %v230 = vld [vmem:[%s229] sm:$0xf]
        %v231 = vld [vmem:[%s195] sm:$0xf]
        %s232 = scalar_lea.vmem %s195, 4
        %v233 = vld [vmem:[%s232] sm:$0xf]
        %s234 = scalar_lea.vmem %s195, 8
        %v235 = vld [vmem:[%s234] sm:$0xf]
        %s236 = scalar_lea.vmem %s195, 12
        %v237 = vld [vmem:[%s236] sm:$0xf]
        %v238 = vsub.f32 0.0, %v224
        %v239 = vmul.f32 %v238, 8.0
        %v240 = vsub.f32 0.0, %v226
        %v241 = vmul.f32 %v240, 8.0
        %v242 = vmul.f32 %v228, 8.0
        %v243 = vmul.f32 %v230, 8.0
        %v244 = vsub.f32 0.0, %v231
        %v245 = vmul.f32 %v244, 8.0
        %v246 = vsub.f32 0.0, %v233
        %v247 = vmul.f32 %v246, 8.0
        %v248 = vmul.f32 %v235, 8.0
        %v249 = vmul.f32 %v237, 8.0
        %v250 = vmin.f32 %v242, %v248
        %v251 = vmax.f32 %v239, %v245
        %v252 = vsub.f32 %v250, %v251
        %v253 = vmax.f32 %v252, 0.0
        %v254 = vmin.f32 %v243, %v249
        %v255 = vmax.f32 %v241, %v247
        %v256 = vsub.f32 %v254, %v255
        %v257 = vmax.f32 %v256, 0.0
        %v258 = vmul.f32 %v253, %v257
        %v259 = vsub.f32 %v242, %v239
        %v260 = vsub.f32 %v243, %v241
        %v261 = vmul.f32 %v259, %v260
        %v262 = vsub.f32 %v248, %v245
        %v263 = vsub.f32 %v249, %v247
        %v264 = vmul.f32 %v262, %v263
        %v265 = vadd.f32 %v261, %v264
        %v266 = vsub.f32 %v265, %v258
        %v267 = vadd.f32 %v266, 1e-07
        %v268 = vrcp.pop %v267
        %v269 = vmul.f32 %v258, %v268
        %v270 = vmax.f32 %v242, %v248
        %v271 = vmin.f32 %v239, %v245
        %v272 = vsub.f32 %v270, %v271
        %v273 = vmax.f32 %v243, %v249
        %v274 = vmin.f32 %v241, %v247
        %v275 = vsub.f32 %v273, %v274
        %v276 = vmul.f32 %v272, %v272
        %v277 = vmul.f32 %v275, %v275
        %v278 = vadd.f32 %v276, %v277
        %v279 = vadd.f32 %v278, 1e-07
        %v280 = vadd.f32 %v239, %v242
        %v281 = vsub.f32 %v280, %v245
        %v282 = vsub.f32 %v281, %v248
        %v283 = vmul.f32 %v282, %v282
        %v284 = vadd.f32 %v241, %v243
        %v285 = vsub.f32 %v284, %v247
        %v286 = vsub.f32 %v285, %v249
        %v287 = vmul.f32 %v286, %v286
        %v288 = vadd.f32 %v283, %v287
        %v289 = vmul.f32 %v288, 0.25
        %v290 = vadd.f32 %v263, 1e-07
        %v291 = vrcp.pop %v290
        %v292 = vmul.f32 %v262, %v291
        %v293 = vand.u32 2147483647, %v292
        %vm294 = vcmp.gt.f32.partialorder %v293, 1.0
        %v295 = vmax.f32 %v293, 1e-30
        %v296 = vrcp.pop %v295
        %v297 = vsel %vm294, %v296, %v293
        %v298 = vmul.f32 %v297, %v297
        %v299 = vmul.f32 %v298, 0.0208351
        %v300 = vadd.f32 %v299, -0.085133
        %v301 = vmul.f32 %v298, %v300
        %v302 = vadd.f32 %v301, 0.180141
        %v303 = vmul.f32 %v298, %v302
        %v304 = vadd.f32 %v303, -0.3302995
        %v305 = vmul.f32 %v298, %v304
        %v306 = vadd.f32 %v305, 0.999866
        %v307 = vmul.f32 %v297, %v306
        %v308 = vsub.f32 1.5707964, %v307
        %v309 = vsel %vm294, %v308, %v307
        %vm310 = vcmp.lt.f32.partialorder %v292, 0.0
        %v311 = vsub.f32 0.0, %v309
        %v312 = vsel %vm310, %v311, %v309
        %v313 = vadd.f32 %v260, 1e-07
        %v314 = vrcp.pop %v313
        %v315 = vmul.f32 %v259, %v314
        %v316 = vand.u32 2147483647, %v315
        %vm317 = vcmp.gt.f32.partialorder %v316, 1.0
        %v318 = vmax.f32 %v316, 1e-30
        %v319 = vrcp.pop %v318
        %v320 = vsel %vm317, %v319, %v316
        %v321 = vmul.f32 %v320, %v320
        %v322 = vmul.f32 %v321, 0.0208351
        %v323 = vadd.f32 %v322, -0.085133
        %v324 = vmul.f32 %v321, %v323
        %v325 = vadd.f32 %v324, 0.180141
        %v326 = vmul.f32 %v321, %v325
        %v327 = vadd.f32 %v326, -0.3302995
        %v328 = vmul.f32 %v321, %v327
        %v329 = vadd.f32 %v328, 0.999866
        %v330 = vmul.f32 %v320, %v329
        %v331 = vsub.f32 1.5707964, %v330
        %v332 = vsel %vm317, %v331, %v330
        %vm333 = vcmp.lt.f32.partialorder %v315, 0.0
        %v334 = vsub.f32 0.0, %v332
        %v335 = vsel %vm333, %v334, %v332
        %v336 = vsub.f32 %v312, %v335
        %v337 = vmul.f32 %v336, 0.40528473
        %v338 = vmul.f32 %v337, %v336
        %v339 = vsub.f32 1.0, %v269
        %v340 = vadd.f32 %v339, %v338
        %v341 = vmax.f32 %v340, 0.0
        %v342 = vadd.f32 %v341, 1e-07
        %v343 = vrcp.pop %v342
        %v344 = vmul.f32 %v338, %v343
        %v345 = vrcp.pop %v279
        %v346 = vmul.f32 %v289, %v345
        %v347 = vadd.f32 %v339, %v346
        %v348 = vmul.f32 %v344, %v338
        %v349 = vadd.f32 %v347, %v348
        %s350 = scalar_lea.vmem %s187, 16
        %v351 = vld [vmem:[%s350] sm:$0xf]
        %s352 = scalar_lea.vmem %s195, 16
        %v353 = vld [vmem:[%s352] sm:$0xf]
        %v354 = vmax.f32 %v351, 0.0
        %v355 = vmul.f32 %v351, %v353
        %v356 = vsub.f32 %v354, %v355
        %v357 = vand.u32 2147483647, %v351
        %v358 = vsub.f32 0.0, %v357
        %v359 = vmul.f32 %v358, 1.442695
        %v360 = vpow.pop %v359
        %v361 = vadd.f32 %v360, 1.0
        %v362 = vlog2.pop %v361
        %v363 = vmul.f32 %v362, 0.6931472
        %v364 = vadd.f32 %v356, %v363
        %s365 = scalar_lea.vmem %s187, 20
        %v366 = vld [vmem:[%s365] sm:$0xf]
        %v367 = vld [vmem:[%s365 + $0x4] sm:$0xf]
        %v368 = vld [vmem:[%s365 + $0x8] sm:$0xf]
        %v369 = vld [vmem:[%s365 + $0xc] sm:$0xf]
        %s370 = scalar_lea.vmem %s195, 20
        %v371 = vld [vmem:[%s370] sm:$0xf]
        %v372 = vld [vmem:[%s370 + $0x4] sm:$0xf]
        %v373 = vld [vmem:[%s370 + $0x8] sm:$0xf]
        %v374 = vld [vmem:[%s370 + $0xc] sm:$0xf]
        %v375 = vand.u32 2147483647, %v366
        %v376 = vand.u32 2147483647, %v367
        %v377 = vand.u32 2147483647, %v368
        %v378 = vand.u32 2147483647, %v369
        %v379 = vsub.f32 0.0, %v375
        %v380 = vsub.f32 0.0, %v376
        %v381 = vsub.f32 0.0, %v377
        %v382 = vsub.f32 0.0, %v378
        %v383 = vmul.f32 %v379, 1.442695
        %v384 = vpow.pop %v383
        %v385 = vmul.f32 %v380, 1.442695
        %v386 = vpow.pop %v385
        %v387 = vmul.f32 %v381, 1.442695
        %v388 = vpow.pop %v387
        %v389 = vmul.f32 %v382, 1.442695
        %v390 = vpow.pop %v389
        %v391 = vadd.f32 %v384, 1.0
        %v392 = vadd.f32 %v386, 1.0
        %v393 = vadd.f32 %v388, 1.0
        %v394 = vadd.f32 %v390, 1.0
        %v395 = vrcp.pop %v391
        %v396 = vrcp.pop %v392
        %v397 = vrcp.pop %v393
        %v398 = vrcp.pop %v394
        %vm399 = vcmp.ge.f32.partialorder %v366, 0.0
        %vm400 = vcmp.ge.f32.partialorder %v367, 0.0
        %vm401 = vcmp.ge.f32.partialorder %v368, 0.0
        %vm402 = vcmp.ge.f32.partialorder %v369, 0.0
        %v403 = vmul.f32 %v384, %v395
        %v404 = vmul.f32 %v386, %v396
        %v405 = vmul.f32 %v388, %v397
        %v406 = vmul.f32 %v390, %v398
        %v407 = vsel %vm399, %v395, %v403
        %v408 = vsel %vm400, %v396, %v404
        %v409 = vsel %vm401, %v397, %v405
        %v410 = vsel %vm402, %v398, %v406
        %v411 = vmax.f32 %v366, 0.0
        %v412 = vmax.f32 %v367, 0.0
        %v413 = vmax.f32 %v368, 0.0
        %v414 = vmax.f32 %v369, 0.0
        %v415 = vmul.f32 %v366, %v371
        %v416 = vmul.f32 %v367, %v372
        %v417 = vmul.f32 %v368, %v373
        %v418 = vmul.f32 %v369, %v374
        %v419 = vsub.f32 %v411, %v415
        %v420 = vsub.f32 %v412, %v416
        %v421 = vsub.f32 %v413, %v417
        %v422 = vsub.f32 %v414, %v418
        %v423 = vlog2.pop %v391
        %v424 = vmul.f32 %v423, 0.6931472
        %v425 = vlog2.pop %v392
        %v426 = vmul.f32 %v425, 0.6931472
        %v427 = vlog2.pop %v393
        %v428 = vmul.f32 %v427, 0.6931472
        %v429 = vlog2.pop %v394
        %v430 = vmul.f32 %v429, 0.6931472
        %v431 = vadd.f32 %v419, %v424
        %v432 = vadd.f32 %v420, %v426
        %v433 = vadd.f32 %v421, %v428
        %v434 = vadd.f32 %v422, %v430
        %v435 = vmul.f32 %v407, %v371
        %v436 = vmul.f32 %v408, %v372
        %v437 = vmul.f32 %v409, %v373
        %v438 = vmul.f32 %v410, %v374
        %v439 = vsub.f32 1.0, %v407
        %v440 = vsub.f32 1.0, %v408
        %v441 = vsub.f32 1.0, %v409
        %v442 = vsub.f32 1.0, %v410
        %v443 = vsub.f32 1.0, %v371
        %v444 = vsub.f32 1.0, %v372
        %v445 = vsub.f32 1.0, %v373
        %v446 = vsub.f32 1.0, %v374
        %v447 = vmul.f32 %v439, %v443
        %v448 = vmul.f32 %v440, %v444
        %v449 = vmul.f32 %v441, %v445
        %v450 = vmul.f32 %v442, %v446
        %v451 = vadd.f32 %v435, %v447
        %v452 = vadd.f32 %v436, %v448
        %v453 = vadd.f32 %v437, %v449
        %v454 = vadd.f32 %v438, %v450
        %v455 = vmul.f32 %v371, 0.25
        %v456 = vmul.f32 %v372, 0.25
        %v457 = vmul.f32 %v373, 0.25
        %v458 = vmul.f32 %v374, 0.25
        %v459 = vmul.f32 %v443, 0.75
        %v460 = vmul.f32 %v444, 0.75
        %v461 = vmul.f32 %v445, 0.75
        %v462 = vmul.f32 %v446, 0.75
        %v463 = vadd.f32 %v455, %v459
        %v464 = vadd.f32 %v456, %v460
        %v465 = vadd.f32 %v457, %v461
        %v466 = vadd.f32 %v458, %v462
        %v467 = vsub.f32 1.0, %v451
        %v468 = vsub.f32 1.0, %v452
        %v469 = vsub.f32 1.0, %v453
        %v470 = vsub.f32 1.0, %v454
        %v471 = vmul.f32 %v463, %v431
        %v472 = vmul.f32 %v464, %v432
        %v473 = vmul.f32 %v465, %v433
        %v474 = vmul.f32 %v466, %v434
        %v475 = vmul.f32 %v471, %v467
        %v476 = vmul.f32 %v472, %v468
        %v477 = vmul.f32 %v473, %v469
        %v478 = vmul.f32 %v474, %v470
        %v479 = vmul.f32 %v475, %v467
        %v480 = vmul.f32 %v476, %v468
        %v481 = vmul.f32 %v477, %v469
        %v482 = vmul.f32 %v478, %v470
        %v483 = vsel %vm216, %v479, 0.0
        %v484 = vsel %vm216, %v480, 0.0
        %v485 = vadd.f32 %v483, %v484
        %v486 = vsel %vm216, %v481, 0.0
        %v487 = vadd.f32 %v485, %v486
        %v488 = vsel %vm216, %v482, 0.0
        %v489 = vadd.f32 %v487, %v488
        %v490 = vld [vmem:[#allocation2] sm:$0xf]
        %v491 = vsel %vm223, %v349, 0.0
        %v492 = vadd.f32 %v490, %v491
        %493 = vst.msk [vmem:[#allocation2] sm:$0xf] %vm216, %v492
        %v494 = vld [vmem:[#allocation3] sm:$0xf]
        %v495 = vsel %vm223, %v364, 0.0
        %v496 = vadd.f32 %v494, %v495
        %497 = vst.msk [vmem:[#allocation3] sm:$0xf] %vm216, %v496
        %v498 = vld [vmem:[#allocation4] sm:$0xf]
        %v499 = vsel %vm211, %v489, 0.0
        %v500 = vadd.f32 %v498, %v499
        %501 = vst.msk [vmem:[#allocation4] sm:$0xf] %vm216, %v500
        %v502 = vld [vmem:[#allocation5] sm:$0xf]
        %v503 = vsel %vm211, %v353, 0.0
        %v504 = vadd.f32 %v502, %v503
        %505 = vst.msk [vmem:[#allocation5] sm:$0xf] %vm216, %v504
        %v506 = vld [vmem:[#allocation6] sm:$0xf]
        %v507 = vsel %vm223, 1.0, 0.0
        %v508 = vadd.f32 %v506, %v507
        %509 = vst.msk [vmem:[#allocation6] sm:$0xf] %vm216, %v508
        // Predicated region
        $region33: #{tpu_custom_call.1} parent=27 // pred_check
          %p510 = pneg %p196
        $region34: #{tpu_custom_call.1} parent=27 // pred_check_branch
          %512 = sbr.rel (%p510) target = $region36
        $region35: #{tpu_custom_call.1} parent=27 // pred_region
          %vm513 = vcmp.eq.s32.totalorder %v207, 0
          %v514 = vld [vmem:[#allocation2] sm:$0xf]
          %v515 = vsel %vm216, %v514, 0.0
          %516 = vadd.xlane.f32.xlu0 %v515
          %v517 = vpop.xlane.xlu0 %516
          %v518 = vrot.slane %v517, 4
          %v519 = vadd.f32 %v517, %v518
          %v520 = vrot.slane %v519, 2
          %v521 = vadd.f32 %v519, %v520
          %v522 = vrot.slane %v521, 1
          %v523 = vadd.f32 %v521, %v522
          %s524 = vtos %v523
          %v525 = vstv %s524
          %v526 = vsel %vm513, %v525, 0.0
          %vm527 = vcmp.eq.s32.totalorder %v207, 1
          %v528 = vld [vmem:[#allocation3] sm:$0xf]
          %v529 = vsel %vm216, %v528, 0.0
          %530 = vadd.xlane.f32.xlu0 %v529
          %v531 = vpop.xlane.xlu0 %530
          %v532 = vrot.slane %v531, 4
          %v533 = vadd.f32 %v531, %v532
          %v534 = vrot.slane %v533, 2
          %v535 = vadd.f32 %v533, %v534
          %v536 = vrot.slane %v535, 1
          %v537 = vadd.f32 %v535, %v536
          %s538 = vtos %v537
          %v539 = vstv %s538
          %v540 = vsel %vm527, %v539, 0.0
          %v541 = vadd.f32 %v526, %v540
          %vm542 = vcmp.eq.s32.totalorder %v207, 2
          %v543 = vld [vmem:[#allocation4] sm:$0xf]
          %v544 = vsel %vm216, %v543, 0.0
          %545 = vadd.xlane.f32.xlu0 %v544
          %v546 = vpop.xlane.xlu0 %545
          %v547 = vrot.slane %v546, 4
          %v548 = vadd.f32 %v546, %v547
          %v549 = vrot.slane %v548, 2
          %v550 = vadd.f32 %v548, %v549
          %v551 = vrot.slane %v550, 1
          %v552 = vadd.f32 %v550, %v551
          %s553 = vtos %v552
          %v554 = vstv %s553
          %v555 = vsel %vm542, %v554, 0.0
          %v556 = vadd.f32 %v541, %v555
          %vm557 = vcmp.eq.s32.totalorder %v207, 3
          %v558 = vld [vmem:[#allocation5] sm:$0xf]
          %v559 = vsel %vm216, %v558, 0.0
          %560 = vadd.xlane.f32.xlu0 %v559
          %v561 = vpop.xlane.xlu0 %560
          %v562 = vrot.slane %v561, 4
          %v563 = vadd.f32 %v561, %v562
          %v564 = vrot.slane %v563, 2
          %v565 = vadd.f32 %v563, %v564
          %v566 = vrot.slane %v565, 1
          %v567 = vadd.f32 %v565, %v566
          %s568 = vtos %v567
          %v569 = vstv %s568
          %v570 = vsel %vm557, %v569, 0.0
          %v571 = vadd.f32 %v556, %v570
          %vm572 = vcmp.eq.s32.totalorder %v207, 4
          %v573 = vld [vmem:[#allocation6] sm:$0xf]
          %v574 = vsel %vm216, %v573, 0.0
          %575 = vadd.xlane.f32.xlu0 %v574
          %v576 = vpop.xlane.xlu0 %575
          %v577 = vrot.slane %v576, 4
          %v578 = vadd.f32 %v576, %v577
          %v579 = vrot.slane %v578, 2
          %v580 = vadd.f32 %v578, %v579
          %v581 = vrot.slane %v580, 1
          %v582 = vadd.f32 %v580, %v581
          %s583 = vtos %v582
          %v584 = vstv %s583
          %v585 = vsel %vm572, %v584, 0.0
          %v586 = vadd.f32 %v571, %v585
          %587 = vst [vmem:[%s179] sm:$0xff] %v586
        $region36: #{tpu_custom_call.1} parent=27 // pred_fallthru
          _
        %s588 = sand.u32 %s92, 1
        %s589 = scalar_lea.sflag [#allocation8], %s588
        %s590 = sand.u32 %s92, 1
        %s591 = smul.addr %s590, 8
        %s592 = scalar_lea.vmem [#allocation7], %s591
        // Predicated region
        $region37: #{tpu_custom_call.1} parent=27 // pred_check
          %p593 = pneg %p102
        $region38: #{tpu_custom_call.1} parent=27 // pred_check_branch
          %595 = sbr.rel (%p593) target = $region40
        $region39: #{tpu_custom_call.1} parent=27 // pred_region
          %s597 = ssub.s32 128, 128
          %598 = vsyncadd %s589, %s597
          %s599 = smul.addr %s20, 128
          %s600 = scalar_lea.hbm %s2, %s599
          %s602 = sshll.u32 %s592, 4
          %s603 = int_to_ptr.vmem [resolvable:$true] %s602
          %605 = dma.vmem_to_hbm [thread:$0]  %s603, 128, %s600, %s589
        $region40: #{tpu_custom_call.1} parent=27 // pred_fallthru
          _
      $region28: #{tpu_custom_call.1} parent=5 // pred_fallthru
        _
      %p606 = scmp.le.s32.totalorder 2, %s11
      // Predicated region
      $region41: #{tpu_custom_call.1} parent=5 // pred_check
        %p607 = pneg %p606
      $region42: #{tpu_custom_call.1} parent=5 // pred_check_branch
        %609 = sbr.rel (%p607) target = $region44
      $region43: #{tpu_custom_call.1} parent=5 // pred_region
        %s610 = ssub.s32 %s11, 2
        // Predicated region
        $region45: #{tpu_custom_call.1} parent=43 // pred_check
          %p611 = pneg %p108
        $region46: #{tpu_custom_call.1} parent=43 // pred_check_branch
          %613 = sbr.rel (%p611) target = $region48
        $region47: #{tpu_custom_call.1} parent=43 // pred_region
          %s614 = sand.u32 %s93, 1
          %s615 = scalar_lea.sflag [#allocation8], %s614
          %s616 = sand.u32 %s93, 1
          %s617 = smul.addr %s616, 8
          %s618 = scalar_lea.vmem [#allocation7], %s617
          %619 = dma.done %s615, 128
        $region48: #{tpu_custom_call.1} parent=43 // pred_fallthru
          _
      $region44: #{tpu_custom_call.1} parent=5 // pred_fallthru
        _
    $region6: #{tpu_custom_call.1} parent=1 // loop_footer
      %s15 = sadd.s32 1, %s11
    $region7: #{tpu_custom_call.1} parent=1 // loop_footer_branch
      %10 = sbr.rel target = $region3
    $region8: #{tpu_custom_call.1} parent=1 // loop_exit
      _
    %620 = vsyncpa [#allocation8], 1
    %s621 = scalar_lea.sflag [#allocation8], 1
    %622 = vsyncpa %s621, 1

</llo_original>
